<compile_context>
chip_gen: v5e
topology: v5e:2x2
jax: 0.10.0
libtpu: 0.0.40
codegen_flags: <defaults>
</compile_context>

<pallas_src>
import jax
import jax.numpy as jnp
from jax.experimental import pallas as pl
from jax.experimental.pallas import tpu as pltpu

D_MODEL = 8
STATE_SIZE = 128
SEQ_LEN = 8
BATCH = 2

TILE_M = 512        # rows per grid step once m = batch*seq_len is large


def _make_kernel(d, n):
    """Build the S6 kernel for static sizes d (d_model) and n (state_size)."""

    def s6_kernel(x_ref, w1_ref, b1_ref, wbc_ref, bbc_ref, y_ref):
        x = x_ref[...].astype(jnp.float32)          # (tm, d)
        w1 = w1_ref[...].astype(jnp.float32)        # (d, d)
        wbc = wbc_ref[...].astype(jnp.float32)      # (d, 2n)  = [w2 | w3]

        # K = d (=8) contraction on the VPU: unrolled broadcast-FMA accumulate.
        # (MXU would be >94% idle at this contraction depth.)
        xk = x[:, 0:1]
        acc_d = xk * w1[0:1, :] + b1_ref[...]       # fc1 pre-activation  (tm, d)
        acc_bc = xk * wbc[0:1, :] + bbc_ref[...]    # [B | C]             (tm, 2n)
        for k in range(1, d):                       # static, fully unrolled
            xk = x[:, k:k + 1]
            acc_d = acc_d + xk * w1[k:k + 1, :]
            acc_bc = acc_bc + xk * wbc[k:k + 1, :]

        # Reduce B*C immediately so the (tm, 2n) slab's live range ends here.
        # y[m,d] = sum_n C[m,n] * (x[m,d]*delta[m,d]*B[m,n])
        #        = x[m,d] * delta[m,d] * sum_n(C[m,n]*B[m,n])   (h0 == 0 contract)
        cb = jnp.sum(acc_bc[:, :n] * acc_bc[:, n:], axis=-1, keepdims=True)  # (tm, 1)

        delta = jax.nn.softplus(acc_d)              # (tm, d), EUP path

        y_ref[...] = (x * delta * cb).astype(y_ref.dtype)

    return s6_kernel


def s6_forward(x, w1, b1, w_bc, b_bc, *, tile_m=TILE_M):
    b, l, d = x.shape
    n = w_bc.shape[1] // 2
    m = b * l
    xf = x.reshape(m, d)

    # Row tiling: TILE_M rows per grid step at real sizes; at toy sizes the whole
    # problem is one (8-aligned) tile and the grid degenerates to (1,).
    if m >= tile_m:
        tm = tile_m                                  # multiple of 8 by construction
    else:
        tm = ((m + 7) // 8) * 8
    m_pad = pl.cdiv(m, tm) * tm
    if m_pad != m:
        xf = jnp.pad(xf, ((0, m_pad - m), (0, 0)))   # padded rows produce y == 0

    kernel = _make_kernel(d, n)

    y = pl.pallas_call(
        kernel,
        out_shape=jax.ShapeDtypeStruct((m_pad, d), x.dtype),
        grid=(m_pad // tm,),
        in_specs=[
            pl.BlockSpec((tm, d), lambda i: (i, 0)),        # x rows (pipelined)
            pl.BlockSpec((d, d), lambda i: (0, 0)),         # fc1 weight (resident)
            pl.BlockSpec((1, d), lambda i: (0, 0)),         # fc1 bias   (resident)
            pl.BlockSpec((d, 2 * n), lambda i: (0, 0)),     # [w2|w3]    (resident)
            pl.BlockSpec((1, 2 * n), lambda i: (0, 0)),     # [b2|b3]    (resident)
        ],
        out_specs=pl.BlockSpec((tm, d), lambda i: (i, 0)),
        compiler_params=pltpu.CompilerParams(
            dimension_semantics=("parallel",),               # megacore sharding on v7x
        ),
    )(xf, w1, b1, w_bc, b_bc)
    return y[:m].reshape(b, l, d)


def init_params(key, d_model, state_size):
    """Deterministic xavier-uniform-style init mirroring nn.Linear / the A parameter."""
    ks = jax.random.split(key, 4)

    def xavier(k, fan_in, fan_out):
        lim = (6.0 / (fan_in + fan_out)) ** 0.5
        return jax.random.uniform(k, (fan_in, fan_out), jnp.float32, -lim, lim)

    return {
        # weights stored as (in, out)  (== torch Linear weight transposed)
        "w1": xavier(ks[0], d_model, d_model),
        "b1": jnp.zeros((1, d_model), jnp.float32),
        "w2": xavier(ks[1], d_model, state_size),
        "b2": jnp.zeros((1, state_size), jnp.float32),
        "w3": xavier(ks[2], d_model, state_size),
        "b3": jnp.zeros((1, state_size), jnp.float32),
        # A is part of the module; with h0 == 0, dA*h0 == 0 and A never affects the
        # forward output — kept only for parameter parity with the torch module.
        "A": xavier(ks[3], d_model, state_size),
    }


def pack_params(params):
    """Pack fc2/fc3 into one lane-aligned slab (d, 2n) + fused bias; fc1 stays separate.

    Layout: lanes [0, n)   -> fc2 (B)
            lanes [n, 2n)  -> fc3 (C)
    Done once outside the hot path.  NOTE: the kernel derives n = w_bc.shape[1] // 2;
    keep this layout and that derivation in sync.
    """
    w_bc = jnp.concatenate([params["w2"], params["w3"]], axis=1)
    b_bc = jnp.concatenate([params["b2"], params["b3"]], axis=1)
    return params["w1"], params["b1"], w_bc, b_bc


def s6_reference(x, params):
    """Pure-JAX reference following the torch code literally."""
    delta = jax.nn.softplus(x @ params["w1"] + params["b1"][0])           # (b,l,d)
    B = x @ params["w2"] + params["b2"][0]                                # (b,l,n)
    C = x @ params["w3"] + params["b3"][0]                                # (b,l,n)
    dB = jnp.einsum("bld,bln->bldn", delta, B)
    dA = jnp.exp(jnp.einsum("bld,dn->bldn", delta, params["A"]))
    h0 = jnp.zeros(dA.shape, x.dtype)
    h = dA * h0 + x[..., None] * dB
    y = jnp.einsum("bln,bldn->bld", C, h)
    return y


if __name__ == "__main__":
    key = jax.random.PRNGKey(0)
    kx, kp = jax.random.split(key)

    params = init_params(kp, D_MODEL, STATE_SIZE)
    w1, b1, w_bc, b_bc = pack_params(params)
    x = jax.random.normal(kx, (BATCH, SEQ_LEN, D_MODEL), jnp.float32)

    y = s6_forward(x, w1, b1, w_bc, b_bc)
    y = jax.block_until_ready(y)

    y_ref = s6_reference(x, params)
    assert y.shape == (BATCH, SEQ_LEN, D_MODEL)
    assert jnp.allclose(y, y_ref, atol=1e-4, rtol=1e-4)

    print("KERNEL_OK")
</pallas_src>

<mosaic_0001>
module attributes {stable_mosaic.version = 11 : i64} {
  func.func @s6_kernel(%arg0: i32, %arg1: memref<16x8xf32, #tpu.memory_space<vmem>>, %arg2: memref<8x8xf32, #tpu.memory_space<vmem>>, %arg3: memref<1x8xf32, #tpu.memory_space<vmem>>, %arg4: memref<8x256xf32, #tpu.memory_space<vmem>>, %arg5: memref<1x256xf32, #tpu.memory_space<vmem>>, %arg6: memref<16x8xf32, #tpu.memory_space<vmem>>) attributes {dimension_semantics = [#tpu.dimension_semantics<parallel>], iteration_bounds = array<i64: 1>, scalar_prefetch = 0 : i64, scratch_operands = 0 : i64, tpu.core_type = #tpu.core_type<tc>, window_params = [{transform_indices = @transform_0, window_bounds = array<i64: 16, 8>}, {pipeline_mode = #tpu.pipeline_mode<synchronous>, transform_indices = @transform_1, window_bounds = array<i64: 8, 8>}, {pipeline_mode = #tpu.pipeline_mode<synchronous>, transform_indices = @transform_2, window_bounds = array<i64: 1, 8>}, {pipeline_mode = #tpu.pipeline_mode<synchronous>, transform_indices = @transform_3, window_bounds = array<i64: 8, 256>}, {pipeline_mode = #tpu.pipeline_mode<synchronous>, transform_indices = @transform_4, window_bounds = array<i64: 1, 256>}, {transform_indices = @transform_5, window_bounds = array<i64: 16, 8>}]} {
    %c0 = arith.constant 0 : index
    %c0_0 = arith.constant 0 : index
    %0 = vector.load %arg1[%c0, %c0_0] : memref<16x8xf32, #tpu.memory_space<vmem>>, vector<16x8xf32>
    %c0_1 = arith.constant 0 : index
    %c0_2 = arith.constant 0 : index
    %1 = vector.load %arg2[%c0_1, %c0_2] : memref<8x8xf32, #tpu.memory_space<vmem>>, vector<8x8xf32>
    %c0_3 = arith.constant 0 : index
    %c0_4 = arith.constant 0 : index
    %2 = vector.load %arg4[%c0_3, %c0_4] : memref<8x256xf32, #tpu.memory_space<vmem>>, vector<8x256xf32>
    %3 = vector.extract_strided_slice %0 {offsets = [0, 0], sizes = [16, 1], strides = [1, 1]} : vector<16x8xf32> to vector<16x1xf32>
    %4 = vector.extract_strided_slice %1 {offsets = [0, 0], sizes = [1, 8], strides = [1, 1]} : vector<8x8xf32> to vector<1x8xf32>
    %5 = vector.broadcast %3 : vector<16x1xf32> to vector<16x8xf32>
    %6 = vector.broadcast %4 : vector<1x8xf32> to vector<16x8xf32>
    %7 = arith.mulf %5, %6 : vector<16x8xf32>
    %c0_5 = arith.constant 0 : index
    %c0_6 = arith.constant 0 : index
    %8 = vector.load %arg3[%c0_5, %c0_6] : memref<1x8xf32, #tpu.memory_space<vmem>>, vector<1x8xf32>
    %9 = vector.broadcast %8 : vector<1x8xf32> to vector<16x8xf32>
    %10 = arith.addf %7, %9 : vector<16x8xf32>
    %11 = vector.extract_strided_slice %2 {offsets = [0, 0], sizes = [1, 256], strides = [1, 1]} : vector<8x256xf32> to vector<1x256xf32>
    %12 = vector.broadcast %3 : vector<16x1xf32> to vector<16x256xf32>
    %13 = vector.broadcast %11 : vector<1x256xf32> to vector<16x256xf32>
    %14 = arith.mulf %12, %13 : vector<16x256xf32>
    %c0_7 = arith.constant 0 : index
    %c0_8 = arith.constant 0 : index
    %15 = vector.load %arg5[%c0_7, %c0_8] : memref<1x256xf32, #tpu.memory_space<vmem>>, vector<1x256xf32>
    %16 = vector.broadcast %15 : vector<1x256xf32> to vector<16x256xf32>
    %17 = arith.addf %14, %16 : vector<16x256xf32>
    %18 = vector.extract_strided_slice %0 {offsets = [0, 1], sizes = [16, 1], strides = [1, 1]} : vector<16x8xf32> to vector<16x1xf32>
    %19 = vector.extract_strided_slice %1 {offsets = [1, 0], sizes = [1, 8], strides = [1, 1]} : vector<8x8xf32> to vector<1x8xf32>
    %20 = vector.broadcast %18 : vector<16x1xf32> to vector<16x8xf32>
    %21 = vector.broadcast %19 : vector<1x8xf32> to vector<16x8xf32>
    %22 = arith.mulf %20, %21 : vector<16x8xf32>
    %23 = arith.addf %10, %22 : vector<16x8xf32>
    %24 = vector.extract_strided_slice %2 {offsets = [1, 0], sizes = [1, 256], strides = [1, 1]} : vector<8x256xf32> to vector<1x256xf32>
    %25 = vector.broadcast %18 : vector<16x1xf32> to vector<16x256xf32>
    %26 = vector.broadcast %24 : vector<1x256xf32> to vector<16x256xf32>
    %27 = arith.mulf %25, %26 : vector<16x256xf32>
    %28 = arith.addf %17, %27 : vector<16x256xf32>
    %29 = vector.extract_strided_slice %0 {offsets = [0, 2], sizes = [16, 1], strides = [1, 1]} : vector<16x8xf32> to vector<16x1xf32>
    %30 = vector.extract_strided_slice %1 {offsets = [2, 0], sizes = [1, 8], strides = [1, 1]} : vector<8x8xf32> to vector<1x8xf32>
    %31 = vector.broadcast %29 : vector<16x1xf32> to vector<16x8xf32>
    %32 = vector.broadcast %30 : vector<1x8xf32> to vector<16x8xf32>
    %33 = arith.mulf %31, %32 : vector<16x8xf32>
    %34 = arith.addf %23, %33 : vector<16x8xf32>
    %35 = vector.extract_strided_slice %2 {offsets = [2, 0], sizes = [1, 256], strides = [1, 1]} : vector<8x256xf32> to vector<1x256xf32>
    %36 = vector.broadcast %29 : vector<16x1xf32> to vector<16x256xf32>
    %37 = vector.broadcast %35 : vector<1x256xf32> to vector<16x256xf32>
    %38 = arith.mulf %36, %37 : vector<16x256xf32>
    %39 = arith.addf %28, %38 : vector<16x256xf32>
    %40 = vector.extract_strided_slice %0 {offsets = [0, 3], sizes = [16, 1], strides = [1, 1]} : vector<16x8xf32> to vector<16x1xf32>
    %41 = vector.extract_strided_slice %1 {offsets = [3, 0], sizes = [1, 8], strides = [1, 1]} : vector<8x8xf32> to vector<1x8xf32>
    %42 = vector.broadcast %40 : vector<16x1xf32> to vector<16x8xf32>
    %43 = vector.broadcast %41 : vector<1x8xf32> to vector<16x8xf32>
    %44 = arith.mulf %42, %43 : vector<16x8xf32>
    %45 = arith.addf %34, %44 : vector<16x8xf32>
    %46 = vector.extract_strided_slice %2 {offsets = [3, 0], sizes = [1, 256], strides = [1, 1]} : vector<8x256xf32> to vector<1x256xf32>
    %47 = vector.broadcast %40 : vector<16x1xf32> to vector<16x256xf32>
    %48 = vector.broadcast %46 : vector<1x256xf32> to vector<16x256xf32>
    %49 = arith.mulf %47, %48 : vector<16x256xf32>
    %50 = arith.addf %39, %49 : vector<16x256xf32>
    %51 = vector.extract_strided_slice %0 {offsets = [0, 4], sizes = [16, 1], strides = [1, 1]} : vector<16x8xf32> to vector<16x1xf32>
    %52 = vector.extract_strided_slice %1 {offsets = [4, 0], sizes = [1, 8], strides = [1, 1]} : vector<8x8xf32> to vector<1x8xf32>
    %53 = vector.broadcast %51 : vector<16x1xf32> to vector<16x8xf32>
    %54 = vector.broadcast %52 : vector<1x8xf32> to vector<16x8xf32>
    %55 = arith.mulf %53, %54 : vector<16x8xf32>
    %56 = arith.addf %45, %55 : vector<16x8xf32>
    %57 = vector.extract_strided_slice %2 {offsets = [4, 0], sizes = [1, 256], strides = [1, 1]} : vector<8x256xf32> to vector<1x256xf32>
    %58 = vector.broadcast %51 : vector<16x1xf32> to vector<16x256xf32>
    %59 = vector.broadcast %57 : vector<1x256xf32> to vector<16x256xf32>
    %60 = arith.mulf %58, %59 : vector<16x256xf32>
    %61 = arith.addf %50, %60 : vector<16x256xf32>
    %62 = vector.extract_strided_slice %0 {offsets = [0, 5], sizes = [16, 1], strides = [1, 1]} : vector<16x8xf32> to vector<16x1xf32>
    %63 = vector.extract_strided_slice %1 {offsets = [5, 0], sizes = [1, 8], strides = [1, 1]} : vector<8x8xf32> to vector<1x8xf32>
    %64 = vector.broadcast %62 : vector<16x1xf32> to vector<16x8xf32>
    %65 = vector.broadcast %63 : vector<1x8xf32> to vector<16x8xf32>
    %66 = arith.mulf %64, %65 : vector<16x8xf32>
    %67 = arith.addf %56, %66 : vector<16x8xf32>
    %68 = vector.extract_strided_slice %2 {offsets = [5, 0], sizes = [1, 256], strides = [1, 1]} : vector<8x256xf32> to vector<1x256xf32>
    %69 = vector.broadcast %62 : vector<16x1xf32> to vector<16x256xf32>
    %70 = vector.broadcast %68 : vector<1x256xf32> to vector<16x256xf32>
    %71 = arith.mulf %69, %70 : vector<16x256xf32>
    %72 = arith.addf %61, %71 : vector<16x256xf32>
    %73 = vector.extract_strided_slice %0 {offsets = [0, 6], sizes = [16, 1], strides = [1, 1]} : vector<16x8xf32> to vector<16x1xf32>
    %74 = vector.extract_strided_slice %1 {offsets = [6, 0], sizes = [1, 8], strides = [1, 1]} : vector<8x8xf32> to vector<1x8xf32>
    %75 = vector.broadcast %73 : vector<16x1xf32> to vector<16x8xf32>
    %76 = vector.broadcast %74 : vector<1x8xf32> to vector<16x8xf32>
    %77 = arith.mulf %75, %76 : vector<16x8xf32>
    %78 = arith.addf %67, %77 : vector<16x8xf32>
    %79 = vector.extract_strided_slice %2 {offsets = [6, 0], sizes = [1, 256], strides = [1, 1]} : vector<8x256xf32> to vector<1x256xf32>
    %80 = vector.broadcast %73 : vector<16x1xf32> to vector<16x256xf32>
    %81 = vector.broadcast %79 : vector<1x256xf32> to vector<16x256xf32>
    %82 = arith.mulf %80, %81 : vector<16x256xf32>
    %83 = arith.addf %72, %82 : vector<16x256xf32>
    %84 = vector.extract_strided_slice %0 {offsets = [0, 7], sizes = [16, 1], strides = [1, 1]} : vector<16x8xf32> to vector<16x1xf32>
    %85 = vector.extract_strided_slice %1 {offsets = [7, 0], sizes = [1, 8], strides = [1, 1]} : vector<8x8xf32> to vector<1x8xf32>
    %86 = vector.broadcast %84 : vector<16x1xf32> to vector<16x8xf32>
    %87 = vector.broadcast %85 : vector<1x8xf32> to vector<16x8xf32>
    %88 = arith.mulf %86, %87 : vector<16x8xf32>
    %89 = arith.addf %78, %88 : vector<16x8xf32>
    %90 = vector.extract_strided_slice %2 {offsets = [7, 0], sizes = [1, 256], strides = [1, 1]} : vector<8x256xf32> to vector<1x256xf32>
    %91 = vector.broadcast %84 : vector<16x1xf32> to vector<16x256xf32>
    %92 = vector.broadcast %90 : vector<1x256xf32> to vector<16x256xf32>
    %93 = arith.mulf %91, %92 : vector<16x256xf32>
    %94 = arith.addf %83, %93 : vector<16x256xf32>
    %95 = vector.extract_strided_slice %94 {offsets = [0, 0], sizes = [16, 128], strides = [1, 1]} : vector<16x256xf32> to vector<16x128xf32>
    %96 = vector.extract_strided_slice %94 {offsets = [0, 128], sizes = [16, 128], strides = [1, 1]} : vector<16x256xf32> to vector<16x128xf32>
    %97 = arith.mulf %95, %96 : vector<16x128xf32>
    %cst = arith.constant dense<0.000000e+00> : vector<16xf32>
    %98 = vector.multi_reduction <add>, %97, %cst [1] : vector<16x128xf32> to vector<16xf32>
    %99 = vector.shape_cast %98 : vector<16xf32> to vector<16x1xf32>
    %cst_9 = arith.constant 0.000000e+00 : f32
    %100 = vector.broadcast %cst_9 : f32 to vector<16x8xf32>
    %101 = arith.maximumf %89, %100 : vector<16x8xf32>
    %102 = vector.broadcast %cst_9 : f32 to vector<16x8xf32>
    %103 = arith.subf %89, %102 : vector<16x8xf32>
    %104 = arith.cmpf one, %103, %103 : vector<16x8xf32>
    %105 = vector.broadcast %cst_9 : f32 to vector<16x8xf32>
    %106 = arith.addf %89, %105 : vector<16x8xf32>
    %107 = math.absf %103 : vector<16x8xf32>
    %cst_10 = arith.constant 0.000000e+00 : f32
    %108 = vector.broadcast %cst_10 : f32 to vector<16x8xf32>
    %109 = arith.subf %108, %107 : vector<16x8xf32>
    %110 = math.exp %109 : vector<16x8xf32>
    %111 = math.log1p %110 : vector<16x8xf32>
    %112 = arith.addf %101, %111 : vector<16x8xf32>
    %113 = arith.select %104, %106, %112 : vector<16x8xi1>, vector<16x8xf32>
    %114 = arith.mulf %0, %113 : vector<16x8xf32>
    %115 = vector.broadcast %99 : vector<16x1xf32> to vector<16x8xf32>
    %116 = arith.mulf %114, %115 : vector<16x8xf32>
    %c0_11 = arith.constant 0 : index
    %c0_12 = arith.constant 0 : index
    %117 = vector.load %arg6[%c0_11, %c0_12] : memref<16x8xf32, #tpu.memory_space<vmem>>, vector<16x8xf32>
    tpu.vector_store %arg6[%c0_11, %c0_12], %116 {strides = array<i32>} : memref<16x8xf32, #tpu.memory_space<vmem>>, vector<16x8xf32>,
    return
  }
  func.func @transform_0(%arg0: i32) -> (i32, i32) {
    %c0_i32 = arith.constant 0 : i32
    %c0_i32_0 = arith.constant 0 : i32
    return %arg0, %c0_i32 : i32, i32
  }
  func.func @transform_1(%arg0: i32) -> (i32, i32) {
    %c0_i32 = arith.constant 0 : i32
    %c0_i32_0 = arith.constant 0 : i32
    %c0_i32_1 = arith.constant 0 : i32
    return %c0_i32, %c0_i32_0 : i32, i32
  }
  func.func @transform_2(%arg0: i32) -> (i32, i32) {
    %c0_i32 = arith.constant 0 : i32
    %c0_i32_0 = arith.constant 0 : i32
    %c0_i32_1 = arith.constant 0 : i32
    return %c0_i32, %c0_i32_0 : i32, i32
  }
  func.func @transform_3(%arg0: i32) -> (i32, i32) {
    %c0_i32 = arith.constant 0 : i32
    %c0_i32_0 = arith.constant 0 : i32
    %c0_i32_1 = arith.constant 0 : i32
    return %c0_i32, %c0_i32_0 : i32, i32
  }
  func.func @transform_4(%arg0: i32) -> (i32, i32) {
    %c0_i32 = arith.constant 0 : i32
    %c0_i32_0 = arith.constant 0 : i32
    %c0_i32_1 = arith.constant 0 : i32
    return %c0_i32, %c0_i32_0 : i32, i32
  }
  func.func @transform_5(%arg0: i32) -> (i32, i32) {
    %c0_i32 = arith.constant 0 : i32
    %c0_i32_0 = arith.constant 0 : i32
    return %arg0, %c0_i32 : i32, i32
  }
}

</mosaic_0001>

<llo_original>
// kernel: tpu_custom_call.1
$region0: #{tpu_custom_call.1}
  #allocation0 [shape = 'u32[]', space=smem, size = 0x4, offset = 0x4, fixed_abs, tag = 'smem constant byte address 0x4 - core index']
  #allocation1 [shape = 'u32[72,128]{1,0:T(1,128)}', space=vmem, size = 0x9000, scoped, tag = 'internal scratch']
  %s0 = inlined_call_operand.vmem [shape: f32[16,8], index: 0, kind: input, shape index: {}]
  %s1 = inlined_call_operand.vmem [shape: f32[8,8], index: 1, kind: input, shape index: {}]
  %s2 = inlined_call_operand.hbm [shape: f32[1,8], index: 2, kind: input, shape index: {}]
  %s3 = inlined_call_operand.vmem [shape: f32[8,256], index: 3, kind: input, shape index: {}]
  %s4 = inlined_call_operand.vmem [shape: f32[1,256], index: 4, kind: input, shape index: {}]
  %s5 = inlined_call_operand.vmem [shape: f32[16,8], index: 5, kind: output, shape index: {}]
  %s6 = sld [smem:[#allocation0]]
  $region34: #{tpu_custom_call.1} parent=0
    _
  %s8 = ssub.s32 1, %s6
  %s9 = scalar_select 0, %s8, %s6
  $region1: #{tpu_custom_call.1} parent=0
    #allocation2 [shape = 'u8[512]{0}', space=vmem, size = 0x400, scoped, tag = 'input window, operand 2, single buffered']
    #allocation3 [shape = 's32[1]{0}', space=sflag, size = 0x4, scoped, tag = 'scoped memory for tpu_custom_call.1']
    %10 = vsyncpa [#allocation3], 0
    // Predicated region
    $region2: #{tpu_custom_call.1} parent=1 // pred_check
      _
    $region3: #{tpu_custom_call.1} parent=1 // pred_check_branch
      %12 = sbr.rel (0) target = $region5
    $region4: #{tpu_custom_call.1} parent=1 // pred_region
      _
    $region5: #{tpu_custom_call.1} parent=1 // pred_fallthru
      _
    // Predicated region
    $region6: #{tpu_custom_call.1} parent=1 // pred_check
      _
    $region7: #{tpu_custom_call.1} parent=1 // pred_check_branch
      %14 = sbr.rel (0) target = $region9
    $region8: #{tpu_custom_call.1} parent=1 // pred_region
      _
    $region9: #{tpu_custom_call.1} parent=1 // pred_fallthru
      _
    // Predicated region
    $region10: #{tpu_custom_call.1} parent=1 // pred_check
      _
    $region11: #{tpu_custom_call.1} parent=1 // pred_check_branch
      %16 = sbr.rel (0) target = $region13
    $region12: #{tpu_custom_call.1} parent=1 // pred_region
      %18 = vsyncadd [#allocation3], 0
      %s20 = sshll.u32 %s2, 4
      %s21 = int_to_ptr.hbm [resolvable:$true] %s20
      %s22 = sshll.u32 [#allocation2], 4
      %s23 = int_to_ptr.vmem [resolvable:$true] %s22
      %25 = dma.hbm_to_vmem [thread:$0]  %s21, 16, %s23, [#allocation3]
    $region13: #{tpu_custom_call.1} parent=1 // pred_fallthru
      _
    // Predicated region
    $region14: #{tpu_custom_call.1} parent=1 // pred_check
      _
    $region15: #{tpu_custom_call.1} parent=1 // pred_check_branch
      %27 = sbr.rel (0) target = $region17
    $region16: #{tpu_custom_call.1} parent=1 // pred_region
      _
    $region17: #{tpu_custom_call.1} parent=1 // pred_fallthru
      _
    // Predicated region
    $region18: #{tpu_custom_call.1} parent=1 // pred_check
      _
    $region19: #{tpu_custom_call.1} parent=1 // pred_check_branch
      %29 = sbr.rel (0) target = $region21
    $region20: #{tpu_custom_call.1} parent=1 // pred_region
      _
    $region21: #{tpu_custom_call.1} parent=1 // pred_fallthru
      _
    // Predicated region
    $region22: #{tpu_custom_call.1} parent=1 // pred_check
      _
    $region23: #{tpu_custom_call.1} parent=1 // pred_check_branch
      %31 = sbr.rel (0) target = $region25
    $region24: #{tpu_custom_call.1} parent=1 // pred_region
      %33 = dma.done [#allocation3], 16
    $region25: #{tpu_custom_call.1} parent=1 // pred_fallthru
      _
    %v34 = vld [vmem:[%s0] sm:$0xff]
    %v35 = vld [vmem:[%s0 + $0x8] sm:$0xff]
    %v36 = vld [vmem:[%s1] sm:$0xff]
    %v37 = vld [vmem:[%s3] sm:$0xff]
    %v38 = vld [vmem:[%s3 + $0x8] sm:$0xff]
    %40 = vset.pattern.permute.xlu0 0
    %41 = vperm.xlu0 %40, %v34
    %v42 = vpop.permute.xlu0 %41
    %45 = vset.pattern.permute.xlu0 0
    %46 = vperm.xlu0 %45, %v35
    %v47 = vpop.permute.xlu0 %46
    %v49 = vperm.slane %v36, 0
    %v50 = vmul.f32 %v42, %v49
    %v51 = vmul.f32 %v47, %v49
    %v52 = vld [vmem:[#allocation2] sm:$0x1]
    %v54 = vperm.slane %v52, 0
    %v56 = vadd.f32 %v50, %v54
    %v57 = vadd.f32 %v51, %v54
    %v58 = vperm.slane %v37, 0
    %v59 = vperm.slane %v38, 0
    %v60 = vmul.f32 %v42, %v58
    %v61 = vmul.f32 %v42, %v59
    %v62 = vmul.f32 %v47, %v58
    %v63 = vmul.f32 %v47, %v59
    %v64 = vld [vmem:[%s4] sm:$0x3]
    %v66 = vperm.slane %v64, 0
    %v67 = vperm.slane %v64, 1
    %v70 = vadd.f32 %v60, %v66
    %v71 = vadd.f32 %v61, %v67
    %v72 = vadd.f32 %v62, %v66
    %v73 = vadd.f32 %v63, %v67
    %74 = vset.pattern.permute.xlu0 1
    %75 = vperm.xlu0 %74, %v34
    %v76 = vpop.permute.xlu0 %75
    %78 = vset.pattern.permute.xlu0 1
    %79 = vperm.xlu0 %78, %v35
    %v80 = vpop.permute.xlu0 %79
    %v82 = vperm.slane %v36, 1
    %v83 = vmul.f32 %v76, %v82
    %v84 = vmul.f32 %v80, %v82
    %v85 = vadd.f32 %v56, %v83
    %v86 = vadd.f32 %v57, %v84
    %v87 = vperm.slane %v37, 1
    %v88 = vperm.slane %v38, 1
    %v89 = vmul.f32 %v76, %v87
    %v90 = vmul.f32 %v76, %v88
    %v91 = vmul.f32 %v80, %v87
    %v92 = vmul.f32 %v80, %v88
    %v93 = vadd.f32 %v70, %v89
    %v94 = vadd.f32 %v71, %v90
    %v95 = vadd.f32 %v72, %v91
    %v96 = vadd.f32 %v73, %v92
    %97 = vset.pattern.permute.xlu0 2
    %98 = vperm.xlu0 %97, %v34
    %v99 = vpop.permute.xlu0 %98
    %101 = vset.pattern.permute.xlu0 2
    %102 = vperm.xlu0 %101, %v35
    %v103 = vpop.permute.xlu0 %102
    %v105 = vperm.slane %v36, 2
    %v106 = vmul.f32 %v99, %v105
    %v107 = vmul.f32 %v103, %v105
    %v108 = vadd.f32 %v85, %v106
    %v109 = vadd.f32 %v86, %v107
    %v110 = vperm.slane %v37, 2
    %v111 = vperm.slane %v38, 2
    %v112 = vmul.f32 %v99, %v110
    %v113 = vmul.f32 %v99, %v111
    %v114 = vmul.f32 %v103, %v110
    %v115 = vmul.f32 %v103, %v111
    %v116 = vadd.f32 %v93, %v112
    %v117 = vadd.f32 %v94, %v113
    %v118 = vadd.f32 %v95, %v114
    %v119 = vadd.f32 %v96, %v115
    %120 = vset.pattern.permute.xlu0 3
    %121 = vperm.xlu0 %120, %v34
    %v122 = vpop.permute.xlu0 %121
    %124 = vset.pattern.permute.xlu0 3
    %125 = vperm.xlu0 %124, %v35
    %v126 = vpop.permute.xlu0 %125
    %v128 = vperm.slane %v36, 3
    %v129 = vmul.f32 %v122, %v128
    %v130 = vmul.f32 %v126, %v128
    %v131 = vadd.f32 %v108, %v129
    %v132 = vadd.f32 %v109, %v130
    %v133 = vperm.slane %v37, 3
    %v134 = vperm.slane %v38, 3
    %v135 = vmul.f32 %v122, %v133
    %v136 = vmul.f32 %v122, %v134
    %v137 = vmul.f32 %v126, %v133
    %v138 = vmul.f32 %v126, %v134
    %v139 = vadd.f32 %v116, %v135
    %v140 = vadd.f32 %v117, %v136
    %v141 = vadd.f32 %v118, %v137
    %v142 = vadd.f32 %v119, %v138
    %143 = vset.pattern.permute.xlu0 4
    %144 = vperm.xlu0 %143, %v34
    %v145 = vpop.permute.xlu0 %144
    %147 = vset.pattern.permute.xlu0 4
    %148 = vperm.xlu0 %147, %v35
    %v149 = vpop.permute.xlu0 %148
    %v151 = vperm.slane %v36, 4
    %v152 = vmul.f32 %v145, %v151
    %v153 = vmul.f32 %v149, %v151
    %v154 = vadd.f32 %v131, %v152
    %v155 = vadd.f32 %v132, %v153
    %v156 = vperm.slane %v37, 4
    %v157 = vperm.slane %v38, 4
    %v158 = vmul.f32 %v145, %v156
    %v159 = vmul.f32 %v145, %v157
    %v160 = vmul.f32 %v149, %v156
    %v161 = vmul.f32 %v149, %v157
    %v162 = vadd.f32 %v139, %v158
    %v163 = vadd.f32 %v140, %v159
    %v164 = vadd.f32 %v141, %v160
    %v165 = vadd.f32 %v142, %v161
    %166 = vset.pattern.permute.xlu0 5
    %167 = vperm.xlu0 %166, %v34
    %v168 = vpop.permute.xlu0 %167
    %170 = vset.pattern.permute.xlu0 5
    %171 = vperm.xlu0 %170, %v35
    %v172 = vpop.permute.xlu0 %171
    %v174 = vperm.slane %v36, 5
    %v175 = vmul.f32 %v168, %v174
    %v176 = vmul.f32 %v172, %v174
    %v177 = vadd.f32 %v154, %v175
    %v178 = vadd.f32 %v155, %v176
    %v179 = vperm.slane %v37, 5
    %v180 = vperm.slane %v38, 5
    %v181 = vmul.f32 %v168, %v179
    %v182 = vmul.f32 %v168, %v180
    %v183 = vmul.f32 %v172, %v179
    %v184 = vmul.f32 %v172, %v180
    %v185 = vadd.f32 %v162, %v181
    %v186 = vadd.f32 %v163, %v182
    %v187 = vadd.f32 %v164, %v183
    %v188 = vadd.f32 %v165, %v184
    %189 = vset.pattern.permute.xlu0 6
    %190 = vperm.xlu0 %189, %v34
    %v191 = vpop.permute.xlu0 %190
    %193 = vset.pattern.permute.xlu0 6
    %194 = vperm.xlu0 %193, %v35
    %v195 = vpop.permute.xlu0 %194
    %v197 = vperm.slane %v36, 6
    %v198 = vmul.f32 %v191, %v197
    %v199 = vmul.f32 %v195, %v197
    %v200 = vadd.f32 %v177, %v198
    %v201 = vadd.f32 %v178, %v199
    %v202 = vperm.slane %v37, 6
    %v203 = vperm.slane %v38, 6
    %v204 = vmul.f32 %v191, %v202
    %v205 = vmul.f32 %v191, %v203
    %v206 = vmul.f32 %v195, %v202
    %v207 = vmul.f32 %v195, %v203
    %v208 = vadd.f32 %v185, %v204
    %v209 = vadd.f32 %v186, %v205
    %v210 = vadd.f32 %v187, %v206
    %v211 = vadd.f32 %v188, %v207
    %212 = vset.pattern.permute.xlu0 7
    %213 = vperm.xlu0 %212, %v34
    %v214 = vpop.permute.xlu0 %213
    %216 = vset.pattern.permute.xlu0 7
    %217 = vperm.xlu0 %216, %v35
    %v218 = vpop.permute.xlu0 %217
    %v220 = vperm.slane %v36, 7
    %v221 = vmul.f32 %v214, %v220
    %v222 = vmul.f32 %v218, %v220
    %v223 = vadd.f32 %v200, %v221
    %v224 = vadd.f32 %v201, %v222
    %v225 = vperm.slane %v37, 7
    %v226 = vperm.slane %v38, 7
    %v227 = vmul.f32 %v214, %v225
    %v228 = vmul.f32 %v214, %v226
    %v229 = vmul.f32 %v218, %v225
    %v230 = vmul.f32 %v218, %v226
    %v231 = vadd.f32 %v208, %v227
    %v232 = vadd.f32 %v209, %v228
    %v233 = vadd.f32 %v210, %v229
    %v234 = vadd.f32 %v211, %v230
    %v235 = vmul.f32 %v231, %v232
    %v236 = vmul.f32 %v233, %v234
    %237 = vadd.xlane.f32.xlu0 %v235
    %v238 = vpop.xlane.xlu0 %237
    %239 = vadd.xlane.f32.xlu0 %v236
    %v240 = vpop.xlane.xlu0 %239
    %v241 = vmax.f32 %v223, 0.0
    %v242 = vmax.f32 %v224, 0.0
    %vm243 = vcmp.ne.f32.partialorder %v223, %v223
    %vm244 = vcmp.ne.f32.partialorder %v224, %v224
    %v245 = vadd.f32 %v223, 0.0
    %v246 = vadd.f32 %v224, 0.0
    %v247 = vand.u32 2147483647, %v223
    %v248 = vand.u32 2147483647, %v224
    %v249 = vsub.f32 0.0, %v247
    %v250 = vsub.f32 0.0, %v248
    %v251 = vmul.f32 %v249, 1.442695
    %v252 = vpow.pop %v251
    %v253 = vmul.f32 %v250, 1.442695
    %v254 = vpow.pop %v253
    %v255 = vadd.f32 %v252, 1.0
    %v256 = vlog2.pop %v255
    %v257 = vmul.f32 %v256, 0.6931472
    %v258 = vmul.f32 -0.5, %v252
    %v259 = vadd.f32 %v258, 1.0
    %v260 = vmul.f32 %v259, %v252
    %v261 = vand.u32 2147483647, %v252
    %vm262 = vcmp.lt.f32.partialorder %v261, 0.0004427343
    %v263 = vsel %vm262, %v260, %v257
    %v264 = vadd.f32 %v254, 1.0
    %v265 = vlog2.pop %v264
    %v266 = vmul.f32 %v265, 0.6931472
    %v267 = vmul.f32 -0.5, %v254
    %v268 = vadd.f32 %v267, 1.0
    %v269 = vmul.f32 %v268, %v254
    %v270 = vand.u32 2147483647, %v254
    %vm271 = vcmp.lt.f32.partialorder %v270, 0.0004427343
    %v272 = vsel %vm271, %v269, %v266
    %v273 = vadd.f32 %v241, %v263
    %v274 = vadd.f32 %v242, %v272
    %v275 = vsel %vm243, %v245, %v273
    %v276 = vsel %vm244, %v246, %v274
    %v277 = vmul.f32 %v34, %v275
    %v278 = vmul.f32 %v35, %v276
    %v279 = vmul.f32 %v277, %v238
    %v280 = vmul.f32 %v278, %v240
    %vm281 = vcmask 64512
    %282 = vst.msk [vmem:[%s5] sm:$0xff] %vm281, %v279
    %283 = vst.msk [vmem:[%s5 + $0x8] sm:$0xff] %vm281, %v280
    // Predicated region
    $region26: #{tpu_custom_call.1} parent=1 // pred_check
      _
    $region27: #{tpu_custom_call.1} parent=1 // pred_check_branch
      %285 = sbr.rel (0) target = $region29
    $region28: #{tpu_custom_call.1} parent=1 // pred_region
      _
    $region29: #{tpu_custom_call.1} parent=1 // pred_fallthru
      _
    // Predicated region
    $region30: #{tpu_custom_call.1} parent=1 // pred_check
      _
    $region31: #{tpu_custom_call.1} parent=1 // pred_check_branch
      %287 = sbr.rel (0) target = $region33
    $region32: #{tpu_custom_call.1} parent=1 // pred_region
      _
    $region33: #{tpu_custom_call.1} parent=1 // pred_fallthru
      _
    %288 = vsyncpa [#allocation3], 1

</llo_original>
